<compile_context>
chip_gen: v7x
topology: tpu7x:2x2x1
jax: 0.10.0
libtpu: 0.0.40
codegen_flags: <defaults>
</compile_context>

<pallas_src>
import functools

import jax
import jax.numpy as jnp
from jax import lax
from jax.experimental import pallas as pl
from jax.experimental.pallas import tpu as pltpu


# ---------------------------------------------------------------------------
# Kernel bodies
# ---------------------------------------------------------------------------

def _attention_kernel_flat(x_ref, o_ref, *, H, W):
    """Lane-dense path: block is (C, H*W), flattened spatial dim on lanes."""
    C, HW = x_ref.shape
    x2 = x_ref[...]                                   # (C, HW), storage dtype

    # 0/1 masks built from iota (exact):
    #   row_map[h, p] = 1 iff p // W == h ;  col_map[w, p] = 1 iff p % W == w
    p_h = lax.broadcasted_iota(jnp.int32, (H, HW), 1)
    h_i = lax.broadcasted_iota(jnp.int32, (H, HW), 0)
    row_map = ((p_h >= h_i * W) & (p_h < (h_i + 1) * W)).astype(jnp.float32)
    p_w = lax.broadcasted_iota(jnp.int32, (W, HW), 1)
    w_i = lax.broadcasted_iota(jnp.int32, (W, HW), 0)
    col_map = ((p_w % W) == w_i).astype(jnp.float32)

    # Per-channel gate (f32 accumulation, exact lane reduction).
    tot = jnp.sum(x2, axis=1, keepdims=True, dtype=jnp.float32)      # (C, 1)
    s_hw = jax.nn.sigmoid(tot * (1.0 / (H * W))) * 2.0               # (C, 1)

    # x_hw in storage dtype (needed for the output anyway — not an extra temp).
    xs = x2 * s_hw.astype(x2.dtype)                                  # (C, HW)

    # q[p] = sum_c x_hw[c, p]  (f32).  Masked lane reductions give the per-H /
    # per-W pools of x_hw without any reshape/transpose of the big tensor.
    q = jnp.sum(xs, axis=0, keepdims=True, dtype=jnp.float32)        # (1, HW)
    s_cw = jax.nn.sigmoid(jnp.sum(row_map * q, axis=1, keepdims=True)
                          * (1.0 / (C * W))) * 2.0                   # (H, 1)
    s_ch = jax.nn.sigmoid(jnp.sum(col_map * q, axis=1, keepdims=True)
                          * (1.0 / (C * H))) * 2.0                   # (W, 1)

    # Broadcast the gates back to the flat spatial axis:
    #   hw_add[p] = s_cw[p // W] + s_ch[p % W]
    hw_add = (jnp.sum(row_map * s_cw, axis=0, keepdims=True)
              + jnp.sum(col_map * s_ch, axis=0, keepdims=True))      # (1, HW)

    hw_x = (1.0 + hw_add).astype(x2.dtype)                           # (1, HW)
    o_ref[...] = (xs * hw_x).astype(o_ref.dtype)


def _attention_kernel_nchw(x_ref, o_ref):
    """Natural-layout path (W >= 128 already lane-dense): block is (C, H, W)."""
    x3 = x_ref[...]                                   # (C, H, W), storage dtype
    C, H, W = x3.shape

    rowsum = jnp.sum(x3, axis=2, keepdims=True, dtype=jnp.float32)   # (C, H, 1)
    colsum = jnp.sum(x3, axis=1, keepdims=True, dtype=jnp.float32)   # (C, 1, W)
    tot = jnp.sum(rowsum, axis=1, keepdims=True)                     # (C, 1, 1)

    s_hw = jax.nn.sigmoid(tot * (1.0 / (H * W))) * 2.0               # (C, 1, 1)
    s_cw = jax.nn.sigmoid(jnp.sum(s_hw * rowsum, axis=0, keepdims=True)
                          * (1.0 / (C * W))) * 2.0                   # (1, H, 1)
    s_ch = jax.nn.sigmoid(jnp.sum(s_hw * colsum, axis=0, keepdims=True)
                          * (1.0 / (C * H))) * 2.0                   # (1, 1, W)

    xs = x3 * s_hw.astype(x3.dtype)
    hw_x = (1.0 + s_cw + s_ch).astype(x3.dtype)                      # (1, H, W)
    o_ref[...] = (xs * hw_x).astype(o_ref.dtype)


# ---------------------------------------------------------------------------
# Wrapper
# ---------------------------------------------------------------------------

def attention(x):
    """x: (N, C, H, W) -> (N, C, H, W). Same dtype in/out (f32 or bf16)."""
    N, C, H, W = x.shape
    HW = H * W
    itemsize = jnp.dtype(x.dtype).itemsize
    block_bytes = C * HW * itemsize
    use_flat = W < 128
    # in + out blocks are double-buffered by the pipeliner; leave room for the
    # small masks / stat temporaries used by the flat path.
    scratch_bytes = 8 * (H + W) * HW * 4 if use_flat else 0
    vmem_limit = int(min(64 * 2**20,
                         max(16 * 2**20,
                             4 * block_bytes + scratch_bytes + (2 << 20))))
    cparams = pltpu.CompilerParams(
        dimension_semantics=("parallel",),   # megacore / 2-TC shard over batch
        vmem_limit_bytes=vmem_limit,
    )

    if use_flat:
        # Lane-dense layout: flatten spatial dims so the block's last dim is H*W.
        x_flat = x.reshape(N, C, HW)
        out = pl.pallas_call(
            functools.partial(_attention_kernel_flat, H=H, W=W),
            out_shape=jax.ShapeDtypeStruct((N, C, HW), x.dtype),
            grid_spec=pltpu.PrefetchScalarGridSpec(
                num_scalar_prefetch=0,
                grid=(N,),
                in_specs=[pl.BlockSpec((pl.Squeezed(), C, HW),
                                       lambda n: (n, 0, 0))],
                out_specs=pl.BlockSpec((pl.Squeezed(), C, HW),
                                       lambda n: (n, 0, 0)),
            ),
            compiler_params=cparams,
        )(x_flat)
        return out.reshape(N, C, H, W)

    return pl.pallas_call(
        _attention_kernel_nchw,
        out_shape=jax.ShapeDtypeStruct((N, C, H, W), x.dtype),
        grid_spec=pltpu.PrefetchScalarGridSpec(
            num_scalar_prefetch=0,
            grid=(N,),
            in_specs=[pl.BlockSpec((pl.Squeezed(), C, H, W),
                                   lambda n: (n, 0, 0, 0))],
            out_specs=pl.BlockSpec((pl.Squeezed(), C, H, W),
                                   lambda n: (n, 0, 0, 0)),
        ),
        compiler_params=cparams,
    )(x)


def attention_ref(x):
    """Pure-JAX reference mirroring the PyTorch forward exactly (f32)."""
    x = x.astype(jnp.float32)
    s_hw = jax.nn.sigmoid(jnp.mean(x, axis=(2, 3), keepdims=True)) * 2.0
    x_hw = s_hw * x
    x1 = jnp.transpose(x_hw, (0, 2, 1, 3))  # (N, H, C, W)
    s_cw = jax.nn.sigmoid(jnp.mean(x1, axis=(2, 3), keepdims=True)) * 2.0
    x_cw = jnp.transpose(s_cw * x1, (0, 2, 1, 3))
    x2 = jnp.transpose(x_hw, (0, 3, 2, 1))  # (N, W, H, C)
    s_ch = jax.nn.sigmoid(jnp.mean(x2, axis=(2, 3), keepdims=True)) * 2.0
    x_ch = jnp.transpose(s_ch * x2, (0, 3, 2, 1))
    return x_cw + x_hw + x_ch


if __name__ == "__main__":
    key = jax.random.PRNGKey(0)
    k1, k2, k3 = jax.random.split(key, 3)

    # Primary shape: flat / lane-dense path (W < 128), f32.
    N, C, H, W = 2, 4, 16, 16
    x = jax.random.normal(k1, (N, C, H, W), dtype=jnp.float32)
    out = attention(x)
    jax.block_until_ready(out)
    ref = attention_ref(x)
    assert out.shape == (N, C, H, W)
    assert jnp.allclose(out, ref, atol=2e-5, rtol=2e-5), "flat path mismatch"

    # Natural-layout path (W >= 128), f32.
    x_wide = jax.random.normal(k2, (2, 4, 8, 128), dtype=jnp.float32)
    out_wide = attention(x_wide)
    jax.block_until_ready(out_wide)
    assert jnp.allclose(out_wide, attention_ref(x_wide),
                        atol=2e-5, rtol=2e-5), "nchw path mismatch"

    # bf16 I/O (stats still accumulate in f32 inside the kernel).
    xb = jax.random.normal(k3, (N, C, H, W), dtype=jnp.bfloat16)
    outb = attention(xb)
    jax.block_until_ready(outb)
    refb = attention_ref(xb.astype(jnp.float32))
    assert outb.dtype == jnp.bfloat16
    assert jnp.allclose(outb.astype(jnp.float32), refb,
                        atol=1.5e-1, rtol=5e-2), "bf16 path mismatch"

    print("KERNEL_OK")
</pallas_src>

<mosaic_0001>
module attributes {stable_mosaic.version = 11 : i64} {
  func.func @_attention_kernel_flat(%arg0: i32, %arg1: memref<1x4x256xf32, #tpu.memory_space<vmem>>, %arg2: memref<1x4x256xf32, #tpu.memory_space<vmem>>) attributes {dimension_semantics = [#tpu.dimension_semantics<parallel>], iteration_bounds = array<i64: 2>, scalar_prefetch = 0 : i64, scratch_operands = 0 : i64, tpu.core_type = #tpu.core_type<tc>, window_params = [{transform_indices = @transform_0, window_bounds = array<i64: 1, 4, 256>}, {transform_indices = @transform_1, window_bounds = array<i64: 1, 4, 256>}]} {
    %c0 = arith.constant 0 : index
    %c0_0 = arith.constant 0 : index
    %c0_1 = arith.constant 0 : index
    %0 = vector.load %arg1[%c0, %c0_0, %c0_1] : memref<1x4x256xf32, #tpu.memory_space<vmem>>, vector<1x4x256xf32>
    %1 = vector.shape_cast %0 : vector<1x4x256xf32> to vector<4x256xf32>
    %2 = tpu.iota {dimensions = array<i32: 1>} : vector<16x256xi32>
    %3 = tpu.iota {dimensions = array<i32: 0>} : vector<16x256xi32>
    %c16_i32 = arith.constant 16 : i32
    %4 = vector.broadcast %c16_i32 : i32 to vector<16x256xi32>
    %5 = arith.muli %3, %4 : vector<16x256xi32>
    %6 = arith.cmpi sge, %2, %5 : vector<16x256xi32>
    %c1_i32 = arith.constant 1 : i32
    %7 = vector.broadcast %c1_i32 : i32 to vector<16x256xi32>
    %8 = arith.addi %3, %7 : vector<16x256xi32>
    %c16_i32_2 = arith.constant 16 : i32
    %9 = vector.broadcast %c16_i32_2 : i32 to vector<16x256xi32>
    %10 = arith.muli %8, %9 : vector<16x256xi32>
    %11 = arith.cmpi slt, %2, %10 : vector<16x256xi32>
    %12 = arith.andi %6, %11 : vector<16x256xi1>
    %13 = arith.extui %12 : vector<16x256xi1> to vector<16x256xi32>
    %14 = arith.sitofp %13 : vector<16x256xi32> to vector<16x256xf32>
    %15 = tpu.iota {dimensions = array<i32: 1>} : vector<16x256xi32>
    %16 = tpu.iota {dimensions = array<i32: 0>} : vector<16x256xi32>
    %c16_i32_3 = arith.constant 16 : i32
    %c0_i32 = arith.constant 0 : i32
    %17 = arith.cmpi eq, %c16_i32_3, %c0_i32 : i32
    %c1_i32_4 = arith.constant 1 : i32
    %18 = arith.select %17, %c1_i32_4, %c16_i32_3 : i32
    %19 = vector.broadcast %18 : i32 to vector<16x256xi32>
    %20 = arith.remsi %15, %19 : vector<16x256xi32>
    %c0_i32_5 = arith.constant 0 : i32
    %21 = vector.broadcast %c0_i32_5 : i32 to vector<16x256xi32>
    %22 = arith.cmpi ne, %20, %21 : vector<16x256xi32>
    %c0_i32_6 = arith.constant 0 : i32
    %23 = vector.broadcast %c0_i32_6 : i32 to vector<16x256xi32>
    %24 = arith.cmpi slt, %20, %23 : vector<16x256xi32>
    %c0_i32_7 = arith.constant 0 : i32
    %25 = arith.cmpi slt, %18, %c0_i32_7 : i32
    %26 = vector.broadcast %25 : i1 to vector<16x256xi1>
    %27 = vector.broadcast %26 : vector<16x256xi1> to vector<16x256xi1>
    %28 = arith.xori %24, %27 : vector<16x256xi1>
    %29 = arith.andi %28, %22 : vector<16x256xi1>
    %30 = vector.broadcast %18 : i32 to vector<16x256xi32>
    %31 = arith.addi %20, %30 : vector<16x256xi32>
    %32 = arith.select %29, %31, %20 : vector<16x256xi1>, vector<16x256xi32>
    %33 = arith.cmpi eq, %32, %16 : vector<16x256xi32>
    %34 = arith.extui %33 : vector<16x256xi1> to vector<16x256xi32>
    %35 = arith.sitofp %34 : vector<16x256xi32> to vector<16x256xf32>
    %cst = arith.constant dense<0.000000e+00> : vector<4xf32>
    %36 = vector.multi_reduction <add>, %1, %cst [1] : vector<4x256xf32> to vector<4xf32>
    %37 = vector.shape_cast %36 : vector<4xf32> to vector<4x1xf32>
    %cst_8 = arith.constant 3.906250e-03 : f32
    %38 = vector.broadcast %cst_8 : f32 to vector<4x1xf32>
    %39 = arith.mulf %37, %38 : vector<4x1xf32>
    %40 = arith.negf %39 : vector<4x1xf32>
    %41 = math.exp %40 : vector<4x1xf32>
    %cst_9 = arith.constant 1.000000e+00 : f32
    %42 = vector.broadcast %cst_9 : f32 to vector<4x1xf32>
    %43 = arith.addf %42, %41 : vector<4x1xf32>
    %44 = arith.divf %42, %43 : vector<4x1xf32>
    %cst_10 = arith.constant 2.000000e+00 : f32
    %45 = vector.broadcast %cst_10 : f32 to vector<4x1xf32>
    %46 = arith.mulf %44, %45 : vector<4x1xf32>
    %47 = vector.broadcast %46 : vector<4x1xf32> to vector<4x256xf32>
    %48 = arith.mulf %1, %47 : vector<4x256xf32>
    %cst_11 = arith.constant dense<0.000000e+00> : vector<256xf32>
    %49 = vector.multi_reduction <add>, %48, %cst_11 [0] : vector<4x256xf32> to vector<256xf32>
    %50 = vector.shape_cast %49 : vector<256xf32> to vector<1x256xf32>
    %51 = vector.broadcast %50 : vector<1x256xf32> to vector<16x256xf32>
    %52 = arith.mulf %14, %51 : vector<16x256xf32>
    %cst_12 = arith.constant dense<0.000000e+00> : vector<16xf32>
    %53 = vector.multi_reduction <add>, %52, %cst_12 [1] : vector<16x256xf32> to vector<16xf32>
    %54 = vector.shape_cast %53 : vector<16xf32> to vector<16x1xf32>
    %cst_13 = arith.constant 1.562500e-02 : f32
    %55 = vector.broadcast %cst_13 : f32 to vector<16x1xf32>
    %56 = arith.mulf %54, %55 : vector<16x1xf32>
    %57 = arith.negf %56 : vector<16x1xf32>
    %58 = math.exp %57 : vector<16x1xf32>
    %cst_14 = arith.constant 1.000000e+00 : f32
    %59 = vector.broadcast %cst_14 : f32 to vector<16x1xf32>
    %60 = arith.addf %59, %58 : vector<16x1xf32>
    %61 = arith.divf %59, %60 : vector<16x1xf32>
    %cst_15 = arith.constant 2.000000e+00 : f32
    %62 = vector.broadcast %cst_15 : f32 to vector<16x1xf32>
    %63 = arith.mulf %61, %62 : vector<16x1xf32>
    %64 = vector.broadcast %50 : vector<1x256xf32> to vector<16x256xf32>
    %65 = arith.mulf %35, %64 : vector<16x256xf32>
    %cst_16 = arith.constant dense<0.000000e+00> : vector<16xf32>
    %66 = vector.multi_reduction <add>, %65, %cst_16 [1] : vector<16x256xf32> to vector<16xf32>
    %67 = vector.shape_cast %66 : vector<16xf32> to vector<16x1xf32>
    %cst_17 = arith.constant 1.562500e-02 : f32
    %68 = vector.broadcast %cst_17 : f32 to vector<16x1xf32>
    %69 = arith.mulf %67, %68 : vector<16x1xf32>
    %70 = arith.negf %69 : vector<16x1xf32>
    %71 = math.exp %70 : vector<16x1xf32>
    %cst_18 = arith.constant 1.000000e+00 : f32
    %72 = vector.broadcast %cst_18 : f32 to vector<16x1xf32>
    %73 = arith.addf %72, %71 : vector<16x1xf32>
    %74 = arith.divf %72, %73 : vector<16x1xf32>
    %cst_19 = arith.constant 2.000000e+00 : f32
    %75 = vector.broadcast %cst_19 : f32 to vector<16x1xf32>
    %76 = arith.mulf %74, %75 : vector<16x1xf32>
    %77 = vector.broadcast %63 : vector<16x1xf32> to vector<16x256xf32>
    %78 = arith.mulf %14, %77 : vector<16x256xf32>
    %cst_20 = arith.constant dense<0.000000e+00> : vector<256xf32>
    %79 = vector.multi_reduction <add>, %78, %cst_20 [0] : vector<16x256xf32> to vector<256xf32>
    %80 = vector.shape_cast %79 : vector<256xf32> to vector<1x256xf32>
    %81 = vector.broadcast %76 : vector<16x1xf32> to vector<16x256xf32>
    %82 = arith.mulf %35, %81 : vector<16x256xf32>
    %cst_21 = arith.constant dense<0.000000e+00> : vector<256xf32>
    %83 = vector.multi_reduction <add>, %82, %cst_21 [0] : vector<16x256xf32> to vector<256xf32>
    %84 = vector.shape_cast %83 : vector<256xf32> to vector<1x256xf32>
    %85 = arith.addf %80, %84 : vector<1x256xf32>
    %cst_22 = arith.constant 1.000000e+00 : f32
    %86 = vector.broadcast %cst_22 : f32 to vector<1x256xf32>
    %87 = arith.addf %86, %85 : vector<1x256xf32>
    %88 = vector.broadcast %87 : vector<1x256xf32> to vector<4x256xf32>
    %89 = arith.mulf %48, %88 : vector<4x256xf32>
    %c0_23 = arith.constant 0 : index
    %c0_24 = arith.constant 0 : index
    %c0_25 = arith.constant 0 : index
    %90 = vector.load %arg2[%c0_23, %c0_24, %c0_25] : memref<1x4x256xf32, #tpu.memory_space<vmem>>, vector<1x4x256xf32>
    %91 = vector.shape_cast %90 : vector<1x4x256xf32> to vector<4x256xf32>
    %92 = vector.shape_cast %89 : vector<4x256xf32> to vector<1x4x256xf32>
    tpu.vector_store %arg2[%c0_23, %c0_24, %c0_25], %92 {strides = array<i32>} : memref<1x4x256xf32, #tpu.memory_space<vmem>>, vector<1x4x256xf32>,
    return
  }
  func.func @transform_0(%arg0: i32) -> (i32, i32, i32) {
    %c0_i32 = arith.constant 0 : i32
    %c0_i32_0 = arith.constant 0 : i32
    %c0_i32_1 = arith.constant 0 : i32
    return %arg0, %c0_i32, %c0_i32_0 : i32, i32, i32
  }
  func.func @transform_1(%arg0: i32) -> (i32, i32, i32) {
    %c0_i32 = arith.constant 0 : i32
    %c0_i32_0 = arith.constant 0 : i32
    %c0_i32_1 = arith.constant 0 : i32
    return %arg0, %c0_i32, %c0_i32_0 : i32, i32, i32
  }
}

</mosaic_0001>

<llo_original>
// kernel: tpu_custom_call.1
$region0: #{tpu_custom_call.1}
  #allocation0 [shape = 'u32[]', space=smem, size = 0x4, offset = 0x4, fixed_abs, tag = 'smem constant byte address 0x4 - core index']
  #allocation1 [shape = 'u32[144,128]{1,0:T(1,128)}', space=vmem, size = 0x12000, scoped, tag = 'internal scratch']
  %s0 = inlined_call_operand.hbm [shape: f32[2,4,256], index: 0, kind: input, shape index: {}]
  %s1 = inlined_call_operand.hbm [shape: f32[2,4,256], index: 1, kind: output, shape index: {}]
  %s2 = sld [smem:[#allocation0]]
  $region41: #{tpu_custom_call.1} parent=0
    _
  %s4 = ssub.s32 1, %s2
  %s5 = scalar_select 0, %s4, %s2
  $region1: #{tpu_custom_call.1} parent=0
    #allocation2 [shape = 'u8[8192]{0}', space=vmem, size = 0x2000, scoped, tag = 'input window, operand 0']
    #allocation3 [shape = 's32[2]{0}', space=sflag, size = 0x8, scoped, tag = 'scoped memory for tpu_custom_call.1']
    #allocation4 [shape = 's32[2]{0}', space=sflag, size = 0x8, scoped, tag = 'scoped memory for tpu_custom_call.1']
    #allocation5 [shape = 'u8[8192]{0}', space=vmem, size = 0x2000, scoped, tag = 'output window, operand 0']
    %6 = vsyncpa [#allocation3], 0
    %s7 = scalar_lea.sflag [#allocation3], 1
    %8 = vsyncpa %s7, 0
    %9 = vsyncpa [#allocation4], 0
    %s10 = scalar_lea.sflag [#allocation4], 1
    %11 = vsyncpa %s10, 0
    loop: start=0, step=1, limit=4
    $region2: #{tpu_custom_call.1} parent=1 // loop_pre_header
      _
    $region3: #{tpu_custom_call.1} parent=1 // loop_header
      %s13 = sphi 0, %s17
      %p14 = scmp.ge.s32.totalorder %s13, 4
      %s23 = sphi 0, %s25
      %s26 = sphi 0, %s23
      %s27 = sphi 0, %s26
      %s43 = sphi 0, %s27
      %s49 = sphi 0, %s51
      %s52 = sphi 0, %s49
      %s53 = sphi 0, %s52
      %s69 = sphi 0, %s53
    $region4: #{tpu_custom_call.1} parent=1 // loop_header_branch
      %16 = sbr.rel (%p14) target = $region8
    $region5: #{tpu_custom_call.1} parent=1 // loop_body
      %s18 = ssub.s32 %s13, 1
      %s19 = ssub.s32 %s13, 2
      %s20 = sadd.s32 %s13, 1
      %s21 = ssub.s32 %s13, %s20
      %p22 = scmp.eq.s32.totalorder %s21, 0
      %s24 = sadd.s32 %s23, 1
      %s25 = scalar_select %p22, %s23, %s24
      %p28 = pneg %p22
      %p29 = scmp.eq.s32.totalorder %s13, 1
      %p30 = por %p28, %p29
      %p31 = scmp.ne.s32.totalorder %s23, %s26
      %p32 = scmp.eq.s32.totalorder %s13, 0
      %p33 = por %p31, %p32
      %p34 = scmp.ne.s32.totalorder %s23, %s26
      %p35 = scmp.eq.s32.totalorder %s18, 1
      %p36 = por %p34, %p35
      %p37 = scmp.ne.s32.totalorder %s26, %s27
      %p38 = scmp.eq.s32.totalorder %s18, 0
      %p39 = por %p37, %p38
      %p40 = scmp.ne.s32.totalorder %s26, %s27
      %p41 = scmp.eq.s32.totalorder %s19, 1
      %p42 = por %p40, %p41
      %p44 = scmp.ne.s32.totalorder %s27, %s43
      %p45 = scmp.eq.s32.totalorder %s19, 0
      %p46 = por %p44, %p45
      %s47 = ssub.s32 %s13, %s20
      %p48 = scmp.eq.s32.totalorder %s47, 0
      %s50 = sadd.s32 %s49, 1
      %s51 = scalar_select %p48, %s49, %s50
      %p54 = pneg %p48
      %p55 = scmp.eq.s32.totalorder %s13, 1
      %p56 = por %p54, %p55
      %p57 = scmp.ne.s32.totalorder %s49, %s52
      %p58 = scmp.eq.s32.totalorder %s13, 0
      %p59 = por %p57, %p58
      %p60 = scmp.ne.s32.totalorder %s49, %s52
      %p61 = scmp.eq.s32.totalorder %s18, 1
      %p62 = por %p60, %p61
      %p63 = scmp.ne.s32.totalorder %s52, %s53
      %p64 = scmp.eq.s32.totalorder %s18, 0
      %p65 = por %p63, %p64
      %p66 = scmp.ne.s32.totalorder %s52, %s53
      %p67 = scmp.eq.s32.totalorder %s19, 1
      %p68 = por %p66, %p67
      %p70 = scmp.ne.s32.totalorder %s53, %s69
      %p71 = scmp.eq.s32.totalorder %s19, 0
      %p72 = por %p70, %p71
      %p73 = scmp.le.s32.totalorder 1, %s13
      %p74 = scmp.lt.s32.totalorder %s13, 3
      %p75 = pnand %p73, %p74
      %p76 = pneg %p75
      // Predicated region
      $region9: #{tpu_custom_call.1} parent=5 // pred_check
        _
      $region10: #{tpu_custom_call.1} parent=5 // pred_check_branch
        %78 = sbr.rel (%p75) target = $region12
      $region11: #{tpu_custom_call.1} parent=5 // pred_region
        %s79 = ssub.s32 %s13, 1
      $region12: #{tpu_custom_call.1} parent=5 // pred_fallthru
        _
      %p80 = scmp.lt.s32.totalorder %s13, 2
      // Predicated region
      $region13: #{tpu_custom_call.1} parent=5 // pred_check
        %p81 = pneg %p80
      $region14: #{tpu_custom_call.1} parent=5 // pred_check_branch
        %83 = sbr.rel (%p81) target = $region16
      $region15: #{tpu_custom_call.1} parent=5 // pred_region
        // Predicated region
        $region17: #{tpu_custom_call.1} parent=15 // pred_check
          %p84 = pneg %p33
        $region18: #{tpu_custom_call.1} parent=15 // pred_check_branch
          %86 = sbr.rel (%p84) target = $region20
        $region19: #{tpu_custom_call.1} parent=15 // pred_region
          %s87 = sand.u32 %s23, 1
          %s88 = scalar_lea.sflag [#allocation3], %s87
          %s89 = sand.u32 %s23, 1
          %s90 = smul.addr %s89, 8
          %s91 = scalar_lea.vmem [#allocation2], %s90
          %s93 = ssub.s32 128, 128
          %94 = vsyncadd %s88, %s93
          %s95 = smul.addr %s13, 2
          %s96 = smul.addr %s95, 64
          %s97 = scalar_lea.hbm %s0, %s96
          %s99 = sshll.u32 %s91, 4
          %s100 = int_to_ptr.vmem [resolvable:$true] %s99
          %102 = dma.hbm_to_vmem [thread:$0]  %s97, 128, %s100, %s88
        $region20: #{tpu_custom_call.1} parent=15 // pred_fallthru
          _
      $region16: #{tpu_custom_call.1} parent=5 // pred_fallthru
        _
      %p103 = scmp.le.s32.totalorder 1, %s13
      %p104 = scmp.lt.s32.totalorder %s13, 3
      %p105 = pnand %p103, %p104
      %p106 = pneg %p105
      // Predicated region
      $region21: #{tpu_custom_call.1} parent=5 // pred_check
        _
      $region22: #{tpu_custom_call.1} parent=5 // pred_check_branch
        %108 = sbr.rel (%p105) target = $region24
      $region23: #{tpu_custom_call.1} parent=5 // pred_region
        %s109 = ssub.s32 %s13, 1
        %s110 = sand.u32 %s26, 1
        %s111 = scalar_lea.sflag [#allocation3], %s110
        %s112 = sand.u32 %s26, 1
        %s113 = smul.addr %s112, 8
        %s114 = scalar_lea.vmem [#allocation2], %s113
        // Predicated region
        $region25: #{tpu_custom_call.1} parent=23 // pred_check
          %p115 = pneg %p39
        $region26: #{tpu_custom_call.1} parent=23 // pred_check_branch
          %117 = sbr.rel (%p115) target = $region28
        $region27: #{tpu_custom_call.1} parent=23 // pred_region
          %118 = dma.done %s111, 128
        $region28: #{tpu_custom_call.1} parent=23 // pred_fallthru
          _
        %s119 = sand.u32 %s26, 1
        %s120 = scalar_lea.sflag [#allocation3], %s119
        %s121 = sand.u32 %s26, 1
        %s122 = smul.addr %s121, 8
        %s123 = scalar_lea.vmem [#allocation2], %s122
        %p124 = pneg %p39
        %p125 = pneg %p36
        %p126 = pneg %p65
        %p127 = pneg %p62
        %s128 = sand.u32 %s52, 1
        %s129 = scalar_lea.sflag [#allocation4], %s128
        %s130 = sand.u32 %s52, 1
        %s131 = smul.addr %s130, 8
        %s132 = scalar_lea.vmem [#allocation5], %s131
        %v133 = vld [vmem:[%s114] sm:$0xff]
        %v134 = vlaneseq
        %v135 = vand.u32 %v134, 127
        %v136 = vadd.s32 %v135, 128
        %v137 = vlaneseq
        %v138 = vshrl.u32 %v137, 7
        %v139 = vadd.s32 %v138, 8
        %v140 = vmul.u32 %v138, 16
        %v141 = vmul.u32 %v139, 16
        %vm142 = vcmp.ge.s32.totalorder %v135, %v140
        %vm143 = vcmp.ge.s32.totalorder %v136, %v140
        %vm144 = vcmp.ge.s32.totalorder %v135, %v141
        %vm145 = vcmp.ge.s32.totalorder %v136, %v141
        %v146 = vadd.s32 %v138, 1
        %v147 = vadd.s32 %v139, 1
        %v148 = vmul.u32 %v146, 16
        %v149 = vmul.u32 %v147, 16
        %vm150 = vcmp.lt.s32.totalorder %v135, %v148
        %vm151 = vcmp.lt.s32.totalorder %v136, %v148
        %vm152 = vcmp.lt.s32.totalorder %v135, %v149
        %vm153 = vcmp.lt.s32.totalorder %v136, %v149
        %vm154 = vmand %vm142, %vm150
        %vm155 = vmand %vm143, %vm151
        %vm156 = vmand %vm144, %vm152
        %vm157 = vmand %vm145, %vm153
        %v158 = vsel %vm154, 1, 0
        %v159 = vsel %vm155, 1, 0
        %v160 = vsel %vm156, 1, 0
        %v161 = vsel %vm157, 1, 0
        %v162 = vcvt.s32.f32 %v158
        %v163 = vcvt.s32.f32 %v159
        %v164 = vcvt.s32.f32 %v160
        %v165 = vcvt.s32.f32 %v161
        %vm166 = vcmp.lt.s32.totalorder %v135, 0
        %v167 = vsub.s32 0, %v135
        %v168 = vsel %vm166, %v167, %v135
        %v169 = vshrl.u32 %v168, 4
        %v170 = vand.u32 %v168, 15
        %v171 = vsub.s32 0, %v170
        %v172 = vsel %vm166, %v171, %v170
        %vm173 = vcmp.lt.s32.totalorder %v136, 0
        %v174 = vsub.s32 0, %v136
        %v175 = vsel %vm173, %v174, %v136
        %v176 = vshrl.u32 %v175, 4
        %v177 = vand.u32 %v175, 15
        %v178 = vsub.s32 0, %v177
        %v179 = vsel %vm173, %v178, %v177
        %vm180 = vcmp.ne.s32.totalorder %v172, 0
        %vm181 = vcmp.ne.s32.totalorder %v179, 0
        %vm182 = vcmp.lt.s32.totalorder %v172, 0
        %vm183 = vcmp.lt.s32.totalorder %v179, 0
        %vm184 = vmand %vm182, %vm180
        %vm185 = vmand %vm183, %vm181
        %v186 = vadd.s32 %v172, 16
        %v187 = vadd.s32 %v179, 16
        %v188 = vsel %vm184, %v186, %v172
        %v189 = vsel %vm185, %v187, %v179
        %vm190 = vcmp.eq.s32.totalorder %v188, %v138
        %vm191 = vcmp.eq.s32.totalorder %v189, %v138
        %vm192 = vcmp.eq.s32.totalorder %v188, %v139
        %vm193 = vcmp.eq.s32.totalorder %v189, %v139
        %v194 = vsel %vm190, 1, 0
        %v195 = vsel %vm191, 1, 0
        %v196 = vsel %vm192, 1, 0
        %v197 = vsel %vm193, 1, 0
        %v198 = vcvt.s32.f32 %v194
        %v199 = vcvt.s32.f32 %v195
        %v200 = vcvt.s32.f32 %v196
        %v201 = vcvt.s32.f32 %v197
        %v203 = vcombine.high %v133, %v133
        %vm205 = vcmask 1043456
        %v206 = vsel %vm205, %v133, 0.0
        %v207 = vsel %vm205, %v203, 0.0
        %v208 = vadd.f32 %v206, %v207
        %209 = vadd.xlane.f32.xlu0 %v208
        %v210 = vpop.xlane.xlu0 %209
        %v211 = vmul.f32 %v210, 0.00390625
        %v212 = vxor.u32 %v211, 2147483648
        %v213 = vmul.f32 %v212, 1.442695
        %v214 = vpow.pop %v213
        %v215 = vadd.f32 %v214, 1.0
        %v216 = vrcp.pop %v215
        %v217 = vmul.f32 1.0, %v216
        %v218 = vmul.f32 %v217, 2.0
        %v221 = vunpack.c.l.s4 839922192
        %v222 = vunpack.c.0.s8 %v221
        %v223 = vlaneseq
        %v224 = vshrl.u32 %v223, 7
        %v225 = vsub.s32 %v222, %v224
        %v226 = vrot.slane %v218, %v225
        %v228 = vmul.f32 %v133, %v226
        %v230 = vcombine.high %v228, %v228
        %v232 = vsel %vm205, %v228, 0.0
        %v233 = vrot.slane %v232, 4
        %v234 = vadd.f32 %v232, %v233
        %v235 = vrot.slane %v234, 2
        %v236 = vadd.f32 %v234, %v235
        %v237 = vrot.slane %v236, 1
        %v238 = vadd.f32 %v236, %v237
        %v239 = vsel %vm205, %v230, 0.0
        %v240 = vrot.slane %v239, 4
        %v241 = vadd.f32 %v239, %v240
        %v242 = vrot.slane %v241, 2
        %v243 = vadd.f32 %v241, %v242
        %v244 = vrot.slane %v243, 1
        %v245 = vadd.f32 %v243, %v244
        %v246 = vmul.f32 %v162, %v238
        %v247 = vmul.f32 %v163, %v245
        %v248 = vmul.f32 %v164, %v238
        %v249 = vmul.f32 %v165, %v245
        %v250 = vadd.f32 %v246, %v247
        %251 = vadd.xlane.f32.xlu0 %v250
        %v252 = vpop.xlane.xlu0 %251
        %v253 = vadd.f32 %v248, %v249
        %254 = vadd.xlane.f32.xlu0 %v253
        %v255 = vpop.xlane.xlu0 %254
        %v256 = vmul.f32 %v252, 0.015625
        %v257 = vmul.f32 %v255, 0.015625
        %v258 = vxor.u32 %v256, 2147483648
        %v259 = vxor.u32 %v257, 2147483648
        %v260 = vmul.f32 %v258, 1.442695
        %v261 = vpow.pop %v260
        %v262 = vmul.f32 %v259, 1.442695
        %v263 = vpow.pop %v262
        %v264 = vadd.f32 %v261, 1.0
        %v265 = vadd.f32 %v263, 1.0
        %v266 = vrcp.pop %v264
        %v267 = vmul.f32 1.0, %v266
        %v268 = vrcp.pop %v265
        %v269 = vmul.f32 1.0, %v268
        %v270 = vmul.f32 %v267, 2.0
        %v271 = vmul.f32 %v269, 2.0
        %v272 = vmul.f32 %v198, %v238
        %v273 = vmul.f32 %v199, %v245
        %v274 = vmul.f32 %v200, %v238
        %v275 = vmul.f32 %v201, %v245
        %v276 = vadd.f32 %v272, %v273
        %277 = vadd.xlane.f32.xlu0 %v276
        %v278 = vpop.xlane.xlu0 %277
        %v279 = vadd.f32 %v274, %v275
        %280 = vadd.xlane.f32.xlu0 %v279
        %v281 = vpop.xlane.xlu0 %280
        %v282 = vmul.f32 %v278, 0.015625
        %v283 = vmul.f32 %v281, 0.015625
        %v284 = vxor.u32 %v282, 2147483648
        %v285 = vxor.u32 %v283, 2147483648
        %v286 = vmul.f32 %v284, 1.442695
        %v287 = vpow.pop %v286
        %v288 = vmul.f32 %v285, 1.442695
        %v289 = vpow.pop %v288
        %v290 = vadd.f32 %v287, 1.0
        %v291 = vadd.f32 %v289, 1.0
        %v292 = vrcp.pop %v290
        %v293 = vmul.f32 1.0, %v292
        %v294 = vrcp.pop %v291
        %v295 = vmul.f32 1.0, %v294
        %v296 = vmul.f32 %v293, 2.0
        %v297 = vmul.f32 %v295, 2.0
        %v298 = vmul.f32 %v162, %v270
        %v299 = vmul.f32 %v163, %v270
        %v300 = vmul.f32 %v164, %v271
        %v301 = vmul.f32 %v165, %v271
        %v302 = vadd.f32 %v298, %v300
        %v303 = vrot.slane %v302, 4
        %v304 = vadd.f32 %v302, %v303
        %v305 = vrot.slane %v304, 2
        %v306 = vadd.f32 %v304, %v305
        %v307 = vrot.slane %v306, 1
        %v308 = vadd.f32 %v306, %v307
        %v309 = vadd.f32 %v299, %v301
        %v310 = vrot.slane %v309, 4
        %v311 = vadd.f32 %v309, %v310
        %v312 = vrot.slane %v311, 2
        %v313 = vadd.f32 %v311, %v312
        %v314 = vrot.slane %v313, 1
        %v315 = vadd.f32 %v313, %v314
        %v316 = vmul.f32 %v198, %v296
        %v317 = vmul.f32 %v199, %v296
        %v318 = vmul.f32 %v200, %v297
        %v319 = vmul.f32 %v201, %v297
        %v320 = vadd.f32 %v316, %v318
        %v321 = vrot.slane %v320, 4
        %v322 = vadd.f32 %v320, %v321
        %v323 = vrot.slane %v322, 2
        %v324 = vadd.f32 %v322, %v323
        %v325 = vrot.slane %v324, 1
        %v326 = vadd.f32 %v324, %v325
        %v327 = vadd.f32 %v317, %v319
        %v328 = vrot.slane %v327, 4
        %v329 = vadd.f32 %v327, %v328
        %v330 = vrot.slane %v329, 2
        %v331 = vadd.f32 %v329, %v330
        %v332 = vrot.slane %v331, 1
        %v333 = vadd.f32 %v331, %v332
        %v334 = vadd.f32 %v308, %v326
        %v335 = vadd.f32 %v315, %v333
        %v336 = vadd.f32 %v334, 1.0
        %v337 = vadd.f32 %v335, 1.0
        %v340 = vcombine.low %v336, %v337
        %v342 = vmul.f32 %v228, %v340
        %343 = vst [vmem:[%s132] sm:$0xff] %v342
        %s344 = sand.u32 %s52, 1
        %s345 = scalar_lea.sflag [#allocation4], %s344
        %s346 = sand.u32 %s52, 1
        %s347 = smul.addr %s346, 8
        %s348 = scalar_lea.vmem [#allocation5], %s347
        // Predicated region
        $region29: #{tpu_custom_call.1} parent=23 // pred_check
          %p349 = pneg %p62
        $region30: #{tpu_custom_call.1} parent=23 // pred_check_branch
          %351 = sbr.rel (%p349) target = $region32
        $region31: #{tpu_custom_call.1} parent=23 // pred_region
          %s353 = ssub.s32 128, 128
          %354 = vsyncadd %s345, %s353
          %s355 = smul.addr %s18, 2
          %s356 = smul.addr %s355, 64
          %s357 = scalar_lea.hbm %s1, %s356
          %s359 = sshll.u32 %s348, 4
          %s360 = int_to_ptr.vmem [resolvable:$true] %s359
          %362 = dma.vmem_to_hbm [thread:$0]  %s360, 128, %s357, %s345
        $region32: #{tpu_custom_call.1} parent=23 // pred_fallthru
          _
      $region24: #{tpu_custom_call.1} parent=5 // pred_fallthru
        _
      %p363 = scmp.le.s32.totalorder 2, %s13
      // Predicated region
      $region33: #{tpu_custom_call.1} parent=5 // pred_check
        %p364 = pneg %p363
      $region34: #{tpu_custom_call.1} parent=5 // pred_check_branch
        %366 = sbr.rel (%p364) target = $region36
      $region35: #{tpu_custom_call.1} parent=5 // pred_region
        %s367 = ssub.s32 %s13, 2
        // Predicated region
        $region37: #{tpu_custom_call.1} parent=35 // pred_check
          %p368 = pneg %p68
        $region38: #{tpu_custom_call.1} parent=35 // pred_check_branch
          %370 = sbr.rel (%p368) target = $region40
        $region39: #{tpu_custom_call.1} parent=35 // pred_region
          %s371 = sand.u32 %s53, 1
          %s372 = scalar_lea.sflag [#allocation4], %s371
          %s373 = sand.u32 %s53, 1
          %s374 = smul.addr %s373, 8
          %s375 = scalar_lea.vmem [#allocation5], %s374
          %376 = dma.done %s372, 128
        $region40: #{tpu_custom_call.1} parent=35 // pred_fallthru
          _
      $region36: #{tpu_custom_call.1} parent=5 // pred_fallthru
        _
    $region6: #{tpu_custom_call.1} parent=1 // loop_footer
      %s17 = sadd.s32 1, %s13
    $region7: #{tpu_custom_call.1} parent=1 // loop_footer_branch
      %12 = sbr.rel target = $region3
    $region8: #{tpu_custom_call.1} parent=1 // loop_exit
      _
    %377 = vsyncpa [#allocation3], 1
    %s378 = scalar_lea.sflag [#allocation3], 1
    %379 = vsyncpa %s378, 1
    %380 = vsyncpa [#allocation4], 1
    %s381 = scalar_lea.sflag [#allocation4], 1
    %382 = vsyncpa %s381, 1

</llo_original>
